<compile_context>
chip_gen: v7x
topology: tpu7x:2x2x1
jax: 0.10.0
libtpu: 0.0.40
codegen_flags: <defaults>
</compile_context>

<pallas_src>
import functools
from typing import NamedTuple

import jax
import jax.numpy as jnp
from jax.experimental import pallas as pl
from jax.experimental.pallas import tpu as pltpu


_TRANSCENDENTAL_ACTS = (2, 3, 5, 7)   # tanh, sigmoid, SiLU, SiLU2 -> bf16 EUP path


def _round_up(n, m):
    return ((n + m - 1) // m) * m


# ---------------------------------------------------------------------------
# Activation zoo (matches Net.__init__ act_type switch).  dtype-preserving.
# ---------------------------------------------------------------------------
def _apply_act(x, act_type):
    if act_type == 1:        # nn.ReLU
        return jnp.maximum(x, 0.0)
    elif act_type == 2:      # nn.Tanh
        return jnp.tanh(x)
    elif act_type == 3:      # nn.Sigmoid
        return jax.nn.sigmoid(x)
    elif act_type == 4:      # nn.ELU (alpha=1)
        em1 = jnp.exp(jnp.minimum(x, 0.0)) - 1.0
        return jnp.where(x > 0, x, em1)
    elif act_type == 5:      # nn.SiLU
        return x * jax.nn.sigmoid(x)
    elif act_type == 6:      # ELU2 = ELU(x)**2
        em1 = jnp.exp(jnp.minimum(x, 0.0)) - 1.0
        e = jnp.where(x > 0, x, em1)
        return e * e
    elif act_type == 7:      # SiLU2 = SiLU(x)**2
        s = x * jax.nn.sigmoid(x)
        return s * s
    elif act_type == 8:      # ELU3: exp(x)-1 for x<0, x**2 for x>=0
        em1 = jnp.exp(jnp.minimum(x, 0.0)) - 1.0
        return jnp.where(x >= 0, x * x, em1)
    else:
        raise ValueError(f"unsupported act_type {act_type}")


def _hidden_act(acc_f32, act_type):
    """Hidden-layer activation; returns bf16 operand for the next MXU pass."""
    if act_type in _TRANSCENDENTAL_ACTS:
        # bf16 EUP path (v6e/v7x): roughly doubles transcendental throughput.
        return _apply_act(acc_f32.astype(jnp.bfloat16), act_type)
    return _apply_act(acc_f32, act_type).astype(jnp.bfloat16)


# ---------------------------------------------------------------------------
# Fused MLP kernel: one batch tile per grid step, full layer chain fused.
# refs = (x_ref, w_0, ..., w_{L-1}, b_cat_ref, out_ref)
# ---------------------------------------------------------------------------
def _mlp_kernel(*refs, act_type, num_layers, bias_offsets, bias_sizes):
    x_ref = refs[0]
    w_refs = refs[1:1 + num_layers]
    b_ref = refs[1 + num_layers]
    out_ref = refs[-1]

    h = x_ref[...]                                     # bf16 (tm, in_p)
    for i in range(num_layers):
        w = w_refs[i][...]                             # bf16 (in_p, out_p), VMEM-resident
        acc = jnp.dot(h, w, preferred_element_type=jnp.float32)   # f32 accumulate (MXU)
        off, sz = bias_offsets[i], bias_sizes[i]
        acc = acc + b_ref[:, off:off + sz]             # f32 bias, lane-aligned slice
        if i < num_layers - 1:
            h = _hidden_act(acc, act_type)             # bf16 operand for next layer
        else:
            out_ref[...] = acc.astype(out_ref.dtype)   # final fc: no activation, bf16 store


class _Meta(NamedTuple):
    act_type: int
    num_layers: int
    dims_p: tuple        # padded feature dims, len = num_layers + 1
    bias_offsets: tuple
    bias_sizes: tuple
    in_dim: int
    out_dim: int
    use_pallas: bool
    tm: int
    n_tiles: int
    vmem_bytes: int


# ---------------------------------------------------------------------------
# Single jitted call path: pad+cast x (fused), run kernel or fused jnp chain,
# slice and cast the result.
# ---------------------------------------------------------------------------
@functools.partial(jax.jit, static_argnames=("meta",))
def _forward(x, weights, b_cat, meta):
    B = x.shape[0]
    dims_p = meta.dims_p
    in_p, out_p = dims_p[0], dims_p[-1]

    # Pad feature dim to lane width + cast to bf16 (fuses under jit; no HBM round-trip).
    x_c = jnp.pad(x.astype(jnp.bfloat16), ((0, 0), (0, in_p - meta.in_dim)))

    if not meta.use_pallas:
        # Small-batch / oversized-weights fallback: plain fused bf16 dot chain.
        # TODO(synk): for weights that exceed VMEM, implement a K/N-tiled layer-chain
        #             kernel ("arbitrary" reduction axis) instead of this XLA fallback.
        h = x_c
        out = None
        for i in range(meta.num_layers):
            acc = jnp.dot(h, weights[i], preferred_element_type=jnp.float32)
            off, sz = meta.bias_offsets[i], meta.bias_sizes[i]
            acc = acc + b_cat[:, off:off + sz]
            if i < meta.num_layers - 1:
                h = _hidden_act(acc, meta.act_type)
            else:
                out = acc
        return out[:, :meta.out_dim].astype(x.dtype)

    b_pad = meta.n_tiles * meta.tm
    x_p = jnp.pad(x_c, ((0, b_pad - B), (0, 0)))       # row padding for the batch grid

    kernel = functools.partial(
        _mlp_kernel,
        act_type=meta.act_type,
        num_layers=meta.num_layers,
        bias_offsets=meta.bias_offsets,
        bias_sizes=meta.bias_sizes,
    )

    in_specs = [pl.BlockSpec((meta.tm, in_p), lambda i: (i, 0))]          # x: batch-tiled
    for li in range(meta.num_layers):                                      # W: resident
        inp, outp = dims_p[li], dims_p[li + 1]
        in_specs.append(pl.BlockSpec((inp, outp), lambda i: (0, 0)))
    in_specs.append(pl.BlockSpec((1, b_cat.shape[1]), lambda i: (0, 0)))   # biases: resident
    out_spec = pl.BlockSpec((meta.tm, out_p), lambda i: (i, 0))            # lane-dense out

    out_padded = pl.pallas_call(
        kernel,
        out_shape=jax.ShapeDtypeStruct((b_pad, out_p), jnp.bfloat16),      # bf16 output
        grid=(meta.n_tiles,),
        in_specs=in_specs,
        out_specs=out_spec,
        compiler_params=pltpu.CompilerParams(
            dimension_semantics=("parallel",),
            vmem_limit_bytes=meta.vmem_bytes,
        ),
    )(x_p, *weights, b_cat)

    return out_padded[:B, :meta.out_dim].astype(x.dtype)


# ---------------------------------------------------------------------------
# Wrapper class: pads / casts / concatenates parameters ONCE at construction.
# params: list of (W[in, out], b[1, out]) for each Linear (hidden + final fc).
# ---------------------------------------------------------------------------
class PallasNet:
    SMALL_BATCH = 64                 # below this, fused XLA chain beats the custom call
    TARGET_TILE = 512                # ~rows per grid step for large batches
    RESIDENT_VMEM_LIMIT = 48 << 20   # conservative fit for v7x's 64 MiB VMEM

    def __init__(self, params, act_type=1):
        self.act_type = int(act_type)
        self.num_layers = len(params)
        self.in_dim = int(params[0][0].shape[0])
        self.out_dim = int(params[-1][0].shape[1])

        dims = [self.in_dim] + [int(w.shape[1]) for w, _ in params]
        self.dims_p = tuple(_round_up(d, 128) for d in dims)     # lane-dense feature dims

        # --- Hoisted, one-time parameter prep (padded bf16 weights, one f32 bias row) ---
        # Invariant (correctness of padding): padded weight ROWS are zero, so padded
        # hidden columns (which evaluate to act(0), e.g. 0.5 for sigmoid) contribute
        # nothing to the next layer.  Padded bias columns are zero.
        w_list, b_parts, bias_offsets, bias_sizes = [], [], [], []
        off = 0
        for li, (w, b) in enumerate(params):
            inp, outp = self.dims_p[li], self.dims_p[li + 1]
            w_p = jnp.zeros((inp, outp), jnp.bfloat16)
            w_p = w_p.at[:w.shape[0], :w.shape[1]].set(jnp.asarray(w, jnp.bfloat16))
            w_list.append(w_p)
            b_p = jnp.zeros((1, outp), jnp.float32)
            b_p = b_p.at[:, :b.shape[1]].set(jnp.asarray(b, jnp.float32))
            b_parts.append(b_p)
            bias_offsets.append(off)
            bias_sizes.append(outp)
            off += outp
        self.weights = tuple(jax.device_put(w) for w in w_list)
        self.b_cat = jax.device_put(jnp.concatenate(b_parts, axis=1))   # (1, sum_padded) f32
        self.bias_offsets = tuple(bias_offsets)
        self.bias_sizes = tuple(bias_sizes)

        self._w_bytes = sum(int(w.size) * 2 for w in self.weights)
        self._b_bytes = int(self.b_cat.size) * 4
        # Explicit resident-weights VMEM check (weights + biases are double-buffered by
        # the pipeline; leave headroom for tiles/temporaries).
        self._resident_fits = (
            2 * (self._w_bytes + self._b_bytes) + (8 << 20) <= self.RESIDENT_VMEM_LIMIT
        )

    def _choose_tiling(self, B):
        """Pick (tm, n_tiles) minimizing batch padding; keep the grid even for 2-TC v7x."""
        n_tiles = max(1, pl.cdiv(B, self.TARGET_TILE))
        if B >= 2 * self.SMALL_BATCH:
            n_tiles = max(n_tiles, 2)          # keep both v7x TensorCores busy
        if n_tiles > 1 and n_tiles % 2:
            n_tiles += 1                       # even grid -> balanced megacore split
        tm = _round_up(pl.cdiv(B, n_tiles), 8)
        return tm, n_tiles

    def __call__(self, x, force_pallas=False):
        B = int(x.shape[0])
        tm, n_tiles = self._choose_tiling(B)
        use_pallas = (force_pallas or B >= self.SMALL_BATCH) and self._resident_fits

        in_p, out_p = self.dims_p[0], self.dims_p[-1]
        # Double-buffered x/out tiles (both bf16) + resident weights/biases + margin.
        vmem_bytes = 2 * (self._w_bytes + self._b_bytes
                          + tm * in_p * 2 + tm * out_p * 2) + (4 << 20)
        vmem_bytes = int(min(max(vmem_bytes, 8 << 20), 48 << 20))

        meta = _Meta(
            act_type=self.act_type,
            num_layers=self.num_layers,
            dims_p=self.dims_p,
            bias_offsets=self.bias_offsets,
            bias_sizes=self.bias_sizes,
            in_dim=self.in_dim,
            out_dim=self.out_dim,
            use_pallas=bool(use_pallas),
            tm=int(tm),
            n_tiles=int(n_tiles),
            vmem_bytes=vmem_bytes,
        )
        return _forward(x, self.weights, self.b_cat, meta)


# ---------------------------------------------------------------------------
# Deterministic parameter init (PyTorch nn.Linear default: U(-k, k), k=1/sqrt(fan_in))
# ---------------------------------------------------------------------------
def init_params(units, key):
    params = []
    for i in range(len(units) - 1):
        fan_in, fan_out = units[i], units[i + 1]
        key, kw, kb = jax.random.split(key, 3)
        bound = 1.0 / jnp.sqrt(fan_in)
        w = jax.random.uniform(kw, (fan_in, fan_out), jnp.float32, -bound, bound)
        b = jax.random.uniform(kb, (1, fan_out), jnp.float32, -bound, bound)
        params.append((w, b))
    return params


def reference_forward(x, params, act_type=1):
    """Mirrors the kernel numerics: bf16 MXU operands, f32 accumulate,
    bf16 transcendental activations (tanh/sigmoid/SiLU/SiLU2)."""
    h = x.astype(jnp.bfloat16)
    for i, (w, b) in enumerate(params):
        acc = jnp.dot(h, w.astype(jnp.bfloat16),
                      preferred_element_type=jnp.float32) + b.astype(jnp.float32)
        if i < len(params) - 1:
            h = _hidden_act(acc, act_type)
        else:
            out = acc
    return out


if __name__ == "__main__":
    # Net(units=[16, 32, 32, 8]) -> 2 hidden Linear+act, 1 final fc.
    units = [16, 32, 32, 8]
    key = jax.random.PRNGKey(0)
    key, kx = jax.random.split(key)
    params = init_params(units, key)

    # Small batch across all activation types; force the Pallas path to exercise the
    # kernel, and also check the small-batch fast path.
    batch = 4
    x = jax.random.normal(kx, (batch, units[0]), jnp.float32)
    for act_type in range(1, 9):
        net = PallasNet(params, act_type=act_type)
        ref = reference_forward(x, params, act_type=act_type)

        out = jax.block_until_ready(net(x, force_pallas=True))     # Pallas kernel path
        assert out.shape == (batch, units[-1])
        assert jnp.allclose(out, ref, atol=1e-2, rtol=1e-2), (
            f"kernel mismatch vs reference for act_type={act_type}")

        out_fast = jax.block_until_ready(net(x))                   # small-batch fast path
        assert jnp.allclose(out_fast, ref, atol=1e-2, rtol=1e-2), (
            f"fast-path mismatch vs reference for act_type={act_type}")

    # Larger, non-aligned batch -> Pallas path with an even 2-step grid (tm=152, b_pad=304).
    batch2 = 300
    key, kx2 = jax.random.split(key)
    x2 = jax.random.normal(kx2, (batch2, units[0]), jnp.float32)
    net2 = PallasNet(params, act_type=1)
    out2 = jax.block_until_ready(net2(x2))
    ref2 = reference_forward(x2, params, act_type=1)
    assert out2.shape == (batch2, units[-1])
    assert jnp.allclose(out2, ref2, atol=1e-2, rtol=1e-2), "mismatch (tiled batch)"

    print("KERNEL_OK")
</pallas_src>

<mosaic_0001>
module attributes {stable_mosaic.version = 11 : i64} {
  func.func @_mlp_kernel(%arg0: i32, %arg1: memref<8x128xbf16, #tpu.memory_space<vmem>>, %arg2: memref<128x128xbf16, #tpu.memory_space<vmem>>, %arg3: memref<128x128xbf16, #tpu.memory_space<vmem>>, %arg4: memref<128x128xbf16, #tpu.memory_space<vmem>>, %arg5: memref<1x384xf32, #tpu.memory_space<vmem>>, %arg6: memref<8x128xbf16, #tpu.memory_space<vmem>>) attributes {dimension_semantics = [#tpu.dimension_semantics<parallel>], iteration_bounds = array<i64: 1>, scalar_prefetch = 0 : i64, scratch_operands = 0 : i64, tpu.core_type = #tpu.core_type<tc>, window_params = [{transform_indices = @transform_0, window_bounds = array<i64: 8, 128>}, {pipeline_mode = #tpu.pipeline_mode<synchronous>, transform_indices = @transform_1, window_bounds = array<i64: 128, 128>}, {pipeline_mode = #tpu.pipeline_mode<synchronous>, transform_indices = @transform_2, window_bounds = array<i64: 128, 128>}, {pipeline_mode = #tpu.pipeline_mode<synchronous>, transform_indices = @transform_3, window_bounds = array<i64: 128, 128>}, {pipeline_mode = #tpu.pipeline_mode<synchronous>, transform_indices = @transform_4, window_bounds = array<i64: 1, 384>}, {transform_indices = @transform_5, window_bounds = array<i64: 8, 128>}]} {
    %c0 = arith.constant 0 : index
    %c0_0 = arith.constant 0 : index
    %0 = vector.load %arg1[%c0, %c0_0] : memref<8x128xbf16, #tpu.memory_space<vmem>>, vector<8x128xbf16>
    %c0_1 = arith.constant 0 : index
    %c0_2 = arith.constant 0 : index
    %1 = vector.load %arg2[%c0_1, %c0_2] : memref<128x128xbf16, #tpu.memory_space<vmem>>, vector<128x128xbf16>
    %cst = arith.constant dense<0.000000e+00> : vector<8x128xf32>
    %2 = tpu.matmul %0, %1, %cst {dimension_numbers = #tpu.dot_dimension_numbers<[1], [0], [0], [1], [0, 0, 1, 1], [], []>} : vector<8x128xbf16>, vector<128x128xbf16>, vector<8x128xf32> -> vector<8x128xf32>
    %c0_3 = arith.constant 0 : index
    %c0_4 = arith.constant 0 : index
    %3 = vector.load %arg5[%c0_3, %c0_4] : memref<1x384xf32, #tpu.memory_space<vmem>>, vector<1x128xf32>
    %4 = vector.broadcast %3 : vector<1x128xf32> to vector<8x128xf32>
    %5 = arith.addf %2, %4 : vector<8x128xf32>
    %cst_5 = arith.constant 0.000000e+00 : f32
    %6 = vector.broadcast %cst_5 : f32 to vector<8x128xf32>
    %7 = arith.maximumf %5, %6 : vector<8x128xf32>
    %8 = arith.truncf %7 : vector<8x128xf32> to vector<8x128xbf16>
    %c0_6 = arith.constant 0 : index
    %c0_7 = arith.constant 0 : index
    %9 = vector.load %arg3[%c0_6, %c0_7] : memref<128x128xbf16, #tpu.memory_space<vmem>>, vector<128x128xbf16>
    %cst_8 = arith.constant dense<0.000000e+00> : vector<8x128xf32>
    %10 = tpu.matmul %8, %9, %cst_8 {dimension_numbers = #tpu.dot_dimension_numbers<[1], [0], [0], [1], [0, 0, 1, 1], [], []>} : vector<8x128xbf16>, vector<128x128xbf16>, vector<8x128xf32> -> vector<8x128xf32>
    %c0_9 = arith.constant 0 : index
    %c128 = arith.constant 128 : index
    %11 = vector.load %arg5[%c0_9, %c128] : memref<1x384xf32, #tpu.memory_space<vmem>>, vector<1x128xf32>
    %12 = vector.broadcast %11 : vector<1x128xf32> to vector<8x128xf32>
    %13 = arith.addf %10, %12 : vector<8x128xf32>
    %cst_10 = arith.constant 0.000000e+00 : f32
    %14 = vector.broadcast %cst_10 : f32 to vector<8x128xf32>
    %15 = arith.maximumf %13, %14 : vector<8x128xf32>
    %16 = arith.truncf %15 : vector<8x128xf32> to vector<8x128xbf16>
    %c0_11 = arith.constant 0 : index
    %c0_12 = arith.constant 0 : index
    %17 = vector.load %arg4[%c0_11, %c0_12] : memref<128x128xbf16, #tpu.memory_space<vmem>>, vector<128x128xbf16>
    %cst_13 = arith.constant dense<0.000000e+00> : vector<8x128xf32>
    %18 = tpu.matmul %16, %17, %cst_13 {dimension_numbers = #tpu.dot_dimension_numbers<[1], [0], [0], [1], [0, 0, 1, 1], [], []>} : vector<8x128xbf16>, vector<128x128xbf16>, vector<8x128xf32> -> vector<8x128xf32>
    %c0_14 = arith.constant 0 : index
    %c256 = arith.constant 256 : index
    %19 = vector.load %arg5[%c0_14, %c256] : memref<1x384xf32, #tpu.memory_space<vmem>>, vector<1x128xf32>
    %20 = vector.broadcast %19 : vector<1x128xf32> to vector<8x128xf32>
    %21 = arith.addf %18, %20 : vector<8x128xf32>
    %22 = arith.truncf %21 : vector<8x128xf32> to vector<8x128xbf16>
    %c0_15 = arith.constant 0 : index
    %c0_16 = arith.constant 0 : index
    %23 = vector.load %arg6[%c0_15, %c0_16] : memref<8x128xbf16, #tpu.memory_space<vmem>>, vector<8x128xbf16>
    tpu.vector_store %arg6[%c0_15, %c0_16], %22 {strides = array<i32>} : memref<8x128xbf16, #tpu.memory_space<vmem>>, vector<8x128xbf16>,
    return
  }
  func.func @transform_0(%arg0: i32) -> (i32, i32) {
    %c0_i32 = arith.constant 0 : i32
    %c0_i32_0 = arith.constant 0 : i32
    return %arg0, %c0_i32 : i32, i32
  }
  func.func @transform_1(%arg0: i32) -> (i32, i32) {
    %c0_i32 = arith.constant 0 : i32
    %c0_i32_0 = arith.constant 0 : i32
    %c0_i32_1 = arith.constant 0 : i32
    return %c0_i32, %c0_i32_0 : i32, i32
  }
  func.func @transform_2(%arg0: i32) -> (i32, i32) {
    %c0_i32 = arith.constant 0 : i32
    %c0_i32_0 = arith.constant 0 : i32
    %c0_i32_1 = arith.constant 0 : i32
    return %c0_i32, %c0_i32_0 : i32, i32
  }
  func.func @transform_3(%arg0: i32) -> (i32, i32) {
    %c0_i32 = arith.constant 0 : i32
    %c0_i32_0 = arith.constant 0 : i32
    %c0_i32_1 = arith.constant 0 : i32
    return %c0_i32, %c0_i32_0 : i32, i32
  }
  func.func @transform_4(%arg0: i32) -> (i32, i32) {
    %c0_i32 = arith.constant 0 : i32
    %c0_i32_0 = arith.constant 0 : i32
    %c0_i32_1 = arith.constant 0 : i32
    return %c0_i32, %c0_i32_0 : i32, i32
  }
  func.func @transform_5(%arg0: i32) -> (i32, i32) {
    %c0_i32 = arith.constant 0 : i32
    %c0_i32_0 = arith.constant 0 : i32
    return %arg0, %c0_i32 : i32, i32
  }
}

</mosaic_0001>

<llo_original>
// kernel: _forward.1
$region0: #{_forward.1}
  #allocation0 [shape = 'u32[]', space=smem, size = 0x4, offset = 0x4, fixed_abs, tag = 'smem constant byte address 0x4 - core index']
  #allocation1 [shape = 'u32[144,128]{1,0:T(1,128)}', space=vmem, size = 0x12000, scoped, tag = 'internal scratch']
  %s0 = inlined_call_operand.vmem [shape: bf16[8,128], index: 0, kind: input, shape index: {}]
  %s1 = inlined_call_operand.hbm [shape: bf16[128,128], index: 1, kind: input, shape index: {}]
  %s2 = inlined_call_operand.hbm [shape: bf16[128,128], index: 2, kind: input, shape index: {}]
  %s3 = inlined_call_operand.hbm [shape: bf16[128,128], index: 3, kind: input, shape index: {}]
  %s4 = inlined_call_operand.vmem [shape: f32[1,384], index: 4, kind: input, shape index: {}]
  %s5 = inlined_call_operand.vmem [shape: bf16[8,128], index: 5, kind: output, shape index: {}]
  %s6 = sld [smem:[#allocation0]]
  $region42: #{_forward.1} parent=0
    _
  %s8 = ssub.s32 1, %s6
  %s9 = scalar_select 0, %s8, %s6
  $region1: #{_forward.1} parent=0
    #allocation2 [shape = 'u8[32768]{0}', space=vmem, size = 0x8000, scoped, tag = 'input window, operand 1, single buffered']
    #allocation3 [shape = 's32[1]{0}', space=sflag, size = 0x4, scoped, tag = 'scoped memory for _forward.1']
    #allocation4 [shape = 'u8[32768]{0}', space=vmem, size = 0x8000, scoped, tag = 'input window, operand 2, single buffered']
    #allocation5 [shape = 's32[1]{0}', space=sflag, size = 0x4, scoped, tag = 'scoped memory for _forward.1']
    #allocation6 [shape = 'u8[32768]{0}', space=vmem, size = 0x8000, scoped, tag = 'input window, operand 3, single buffered']
    %10 = vsyncpa [#allocation3], 0
    %11 = vsyncpa [#allocation5], 0
    // Predicated region
    $region2: #{_forward.1} parent=1 // pred_check
      _
    $region3: #{_forward.1} parent=1 // pred_check_branch
      %13 = sbr.rel (0) target = $region5
    $region4: #{_forward.1} parent=1 // pred_region
      _
    $region5: #{_forward.1} parent=1 // pred_fallthru
      _
    // Predicated region
    $region6: #{_forward.1} parent=1 // pred_check
      _
    $region7: #{_forward.1} parent=1 // pred_check_branch
      %15 = sbr.rel (0) target = $region9
    $region8: #{_forward.1} parent=1 // pred_region
      %s17 = ssub.s32 1024, 1024
      %18 = vsyncadd [#allocation3], %s17
      %s19 = sshll.u32 [#allocation2], 4
      %s20 = int_to_ptr.vmem [resolvable:$true] %s19
      %25 = dma.hbm_to_vmem [thread:$0]  %s1, 1024, %s20, [#allocation3], 64, 64, 4
    $region9: #{_forward.1} parent=1 // pred_fallthru
      _
    // Predicated region
    $region10: #{_forward.1} parent=1 // pred_check
      _
    $region11: #{_forward.1} parent=1 // pred_check_branch
      %27 = sbr.rel (0) target = $region13
    $region12: #{_forward.1} parent=1 // pred_region
      %s29 = ssub.s32 1024, 1024
      %30 = vsyncadd [#allocation5], %s29
      %s31 = sshll.u32 [#allocation4], 4
      %s32 = int_to_ptr.vmem [resolvable:$true] %s31
      %37 = dma.hbm_to_vmem [thread:$0]  %s2, 1024, %s32, [#allocation5], 64, 64, 4
    $region13: #{_forward.1} parent=1 // pred_fallthru
      _
    // Predicated region
    $region14: #{_forward.1} parent=1 // pred_check
      _
    $region15: #{_forward.1} parent=1 // pred_check_branch
      %39 = sbr.rel (0) target = $region17
    $region16: #{_forward.1} parent=1 // pred_region
      %s41 = ssub.s32 1024, 1024
      %42 = vsyncadd [#allocation5], %s41
      %s43 = sshll.u32 [#allocation6], 4
      %s44 = int_to_ptr.vmem [resolvable:$true] %s43
      %49 = dma.hbm_to_vmem [thread:$0]  %s3, 1024, %s44, [#allocation5], 64, 64, 4
    $region17: #{_forward.1} parent=1 // pred_fallthru
      _
    // Predicated region
    $region18: #{_forward.1} parent=1 // pred_check
      _
    $region19: #{_forward.1} parent=1 // pred_check_branch
      %51 = sbr.rel (0) target = $region21
    $region20: #{_forward.1} parent=1 // pred_region
      _
    $region21: #{_forward.1} parent=1 // pred_fallthru
      _
    // Predicated region
    $region22: #{_forward.1} parent=1 // pred_check
      _
    $region23: #{_forward.1} parent=1 // pred_check_branch
      %53 = sbr.rel (0) target = $region25
    $region24: #{_forward.1} parent=1 // pred_region
      %54 = dma.done [#allocation3], 1024
    $region25: #{_forward.1} parent=1 // pred_fallthru
      _
    // Predicated region
    $region26: #{_forward.1} parent=1 // pred_check
      _
    $region27: #{_forward.1} parent=1 // pred_check_branch
      %56 = sbr.rel (0) target = $region29
    $region28: #{_forward.1} parent=1 // pred_region
      %57 = dma.done [#allocation5], 1024
    $region29: #{_forward.1} parent=1 // pred_fallthru
      _
    // Predicated region
    $region30: #{_forward.1} parent=1 // pred_check
      _
    $region31: #{_forward.1} parent=1 // pred_check_branch
      %59 = sbr.rel (0) target = $region33
    $region32: #{_forward.1} parent=1 // pred_region
      %60 = dma.done [#allocation5], 1024
    $region33: #{_forward.1} parent=1 // pred_fallthru
      _
    %v62 = vld [vmem:[%s0] sm:$0xf]
    %v63 = vld [vmem:[#allocation2] sm:$0xf]
    %v64 = vld [vmem:[#allocation2 + $0x4] sm:$0xf]
    %v65 = vld [vmem:[#allocation2 + $0x8] sm:$0xf]
    %v66 = vld [vmem:[#allocation2 + $0xc] sm:$0xf]
    %v67 = vld [vmem:[#allocation2 + $0x10] sm:$0xf]
    %v68 = vld [vmem:[#allocation2 + $0x14] sm:$0xf]
    %v69 = vld [vmem:[#allocation2 + $0x18] sm:$0xf]
    %v70 = vld [vmem:[#allocation2 + $0x1c] sm:$0xf]
    %v71 = vld [vmem:[#allocation2 + $0x20] sm:$0xf]
    %v72 = vld [vmem:[#allocation2 + $0x24] sm:$0xf]
    %v73 = vld [vmem:[#allocation2 + $0x28] sm:$0xf]
    %v74 = vld [vmem:[#allocation2 + $0x2c] sm:$0xf]
    %v75 = vld [vmem:[#allocation2 + $0x30] sm:$0xf]
    %v76 = vld [vmem:[#allocation2 + $0x34] sm:$0xf]
    %v77 = vld [vmem:[#allocation2 + $0x38] sm:$0xf]
    %v78 = vld [vmem:[#allocation2 + $0x3c] sm:$0xf]
    %v79 = vld [vmem:[%s4] sm:$0x1]
    %v81 = vlaneseq
    %v82 = vshrl.u32 %v81, 7
    %v83 = vsub.s32 0, %v82
    %v84 = vrot.slane %v79, %v83
    %v102 = vunpack.c.l.b16 %v63
    %v103 = vunpack.c.l.b16 %v64
    %v104 = vunpack.c.l.b16 %v65
    %v105 = vunpack.c.l.b16 %v66
    %v106 = vunpack.c.l.b16 %v67
    %v107 = vunpack.c.l.b16 %v68
    %v108 = vunpack.c.l.b16 %v69
    %v109 = vunpack.c.l.b16 %v70
    %v110 = vunpack.c.l.b16 %v71
    %v111 = vunpack.c.l.b16 %v72
    %v112 = vunpack.c.l.b16 %v73
    %v113 = vunpack.c.l.b16 %v74
    %v114 = vunpack.c.l.b16 %v75
    %v115 = vunpack.c.l.b16 %v76
    %v116 = vunpack.c.l.b16 %v77
    %v117 = vunpack.c.l.b16 %v78
    %v118 = vpack.c.b16 %v103, %v102
    %v119 = vpack.c.b16 %v105, %v104
    %v120 = vpack.c.b16 %v107, %v106
    %v121 = vpack.c.b16 %v109, %v108
    %v122 = vpack.c.b16 %v111, %v110
    %v123 = vpack.c.b16 %v113, %v112
    %v124 = vpack.c.b16 %v115, %v114
    %v125 = vpack.c.b16 %v117, %v116
    %134 = vmatprep.subr.bf16.mxu0 0
    %135 = vmatpush1.bf16.msra.mxu0 %v118
    %136 = vmatprep.subr.bf16.mxu0 0
    %137 = vmatpush1.bf16.msra.mxu0 %v119
    %138 = vmatprep.subr.bf16.mxu0 0
    %139 = vmatpush1.bf16.msra.mxu0 %v120
    %140 = vmatprep.subr.bf16.mxu0 0
    %141 = vmatpush1.bf16.msra.mxu0 %v121
    %142 = vmatprep.subr.bf16.mxu0 0
    %143 = vmatpush1.bf16.msra.mxu0 %v122
    %144 = vmatprep.subr.bf16.mxu0 0
    %145 = vmatpush1.bf16.msra.mxu0 %v123
    %146 = vmatprep.subr.bf16.mxu0 0
    %147 = vmatpush1.bf16.msra.mxu0 %v124
    %148 = vmatprep.subr.bf16.mxu0 0
    %149 = vmatpush1.bf16.msra.mxu0 %v125
    %150 = vmatprep.subr.bf16.mxu0 0
    %151 = vmatpush1.bf16.msra.mxu0 0
    %152 = vmatprep.subr.bf16.mxu0 0
    %153 = vmatpush1.bf16.msra.mxu0 0
    %154 = vmatprep.subr.bf16.mxu0 0
    %155 = vmatpush1.bf16.msra.mxu0 0
    %156 = vmatprep.subr.bf16.mxu0 0
    %157 = vmatpush1.bf16.msra.mxu0 0
    %158 = vmatprep.subr.bf16.mxu0 0
    %159 = vmatpush1.bf16.msra.mxu0 0
    %160 = vmatprep.subr.bf16.mxu0 0
    %161 = vmatpush1.bf16.msra.mxu0 0
    %162 = vmatprep.subr.bf16.mxu0 0
    %163 = vmatpush1.bf16.msra.mxu0 0
    %164 = vmatprep.subr.bf16.mxu0 0
    %165 = vmatpush1.bf16.msra.mxu0 0
    %166 = vmatprep.mubr.bf16.mxu0 0
    %167 = vmatmul.mubr.bf16.gmra.mrb[0].mxu0 %v62
    %v168 = vpop.f32.mrb[0].mxu0
    %v169 = vadd.f32 %v84, %v168
    %v170 = vpop.f32.mrb[0].mxu0
    %v171 = vpop.f32.mrb[0].mxu0
    %v172 = vpop.f32.mrb[0].mxu0
    %173 = vdwg.mxu0
    %v174 = vmax.f32 %v169, 0.0
    %v175 = vpack.c.bf16 %v174, %v174
    %v176 = vld [vmem:[#allocation4] sm:$0xf]
    %v177 = vld [vmem:[#allocation4 + $0x4] sm:$0xf]
    %v178 = vld [vmem:[#allocation4 + $0x8] sm:$0xf]
    %v179 = vld [vmem:[#allocation4 + $0xc] sm:$0xf]
    %v180 = vld [vmem:[#allocation4 + $0x10] sm:$0xf]
    %v181 = vld [vmem:[#allocation4 + $0x14] sm:$0xf]
    %v182 = vld [vmem:[#allocation4 + $0x18] sm:$0xf]
    %v183 = vld [vmem:[#allocation4 + $0x1c] sm:$0xf]
    %v184 = vld [vmem:[#allocation4 + $0x20] sm:$0xf]
    %v185 = vld [vmem:[#allocation4 + $0x24] sm:$0xf]
    %v186 = vld [vmem:[#allocation4 + $0x28] sm:$0xf]
    %v187 = vld [vmem:[#allocation4 + $0x2c] sm:$0xf]
    %v188 = vld [vmem:[#allocation4 + $0x30] sm:$0xf]
    %v189 = vld [vmem:[#allocation4 + $0x34] sm:$0xf]
    %v190 = vld [vmem:[#allocation4 + $0x38] sm:$0xf]
    %v191 = vld [vmem:[#allocation4 + $0x3c] sm:$0xf]
    %v192 = vld [vmem:[%s4 + $0x1] sm:$0x1]
    %v194 = vlaneseq
    %v195 = vshrl.u32 %v194, 7
    %v196 = vsub.s32 0, %v195
    %v197 = vrot.slane %v192, %v196
    %v215 = vunpack.c.l.b16 %v176
    %v216 = vunpack.c.l.b16 %v177
    %v217 = vunpack.c.l.b16 %v178
    %v218 = vunpack.c.l.b16 %v179
    %v219 = vunpack.c.l.b16 %v180
    %v220 = vunpack.c.l.b16 %v181
    %v221 = vunpack.c.l.b16 %v182
    %v222 = vunpack.c.l.b16 %v183
    %v223 = vunpack.c.l.b16 %v184
    %v224 = vunpack.c.l.b16 %v185
    %v225 = vunpack.c.l.b16 %v186
    %v226 = vunpack.c.l.b16 %v187
    %v227 = vunpack.c.l.b16 %v188
    %v228 = vunpack.c.l.b16 %v189
    %v229 = vunpack.c.l.b16 %v190
    %v230 = vunpack.c.l.b16 %v191
    %v231 = vpack.c.b16 %v216, %v215
    %v232 = vpack.c.b16 %v218, %v217
    %v233 = vpack.c.b16 %v220, %v219
    %v234 = vpack.c.b16 %v222, %v221
    %v235 = vpack.c.b16 %v224, %v223
    %v236 = vpack.c.b16 %v226, %v225
    %v237 = vpack.c.b16 %v228, %v227
    %v238 = vpack.c.b16 %v230, %v229
    %247 = vmatprep.subr.bf16.mxu0 0
    %248 = vmatpush1.bf16.msra.mxu0 %v231
    %249 = vmatprep.subr.bf16.mxu0 0
    %250 = vmatpush1.bf16.msra.mxu0 %v232
    %251 = vmatprep.subr.bf16.mxu0 0
    %252 = vmatpush1.bf16.msra.mxu0 %v233
    %253 = vmatprep.subr.bf16.mxu0 0
    %254 = vmatpush1.bf16.msra.mxu0 %v234
    %255 = vmatprep.subr.bf16.mxu0 0
    %256 = vmatpush1.bf16.msra.mxu0 %v235
    %257 = vmatprep.subr.bf16.mxu0 0
    %258 = vmatpush1.bf16.msra.mxu0 %v236
    %259 = vmatprep.subr.bf16.mxu0 0
    %260 = vmatpush1.bf16.msra.mxu0 %v237
    %261 = vmatprep.subr.bf16.mxu0 0
    %262 = vmatpush1.bf16.msra.mxu0 %v238
    %263 = vmatprep.subr.bf16.mxu0 0
    %264 = vmatpush1.bf16.msra.mxu0 0
    %265 = vmatprep.subr.bf16.mxu0 0
    %266 = vmatpush1.bf16.msra.mxu0 0
    %267 = vmatprep.subr.bf16.mxu0 0
    %268 = vmatpush1.bf16.msra.mxu0 0
    %269 = vmatprep.subr.bf16.mxu0 0
    %270 = vmatpush1.bf16.msra.mxu0 0
    %271 = vmatprep.subr.bf16.mxu0 0
    %272 = vmatpush1.bf16.msra.mxu0 0
    %273 = vmatprep.subr.bf16.mxu0 0
    %274 = vmatpush1.bf16.msra.mxu0 0
    %275 = vmatprep.subr.bf16.mxu0 0
    %276 = vmatpush1.bf16.msra.mxu0 0
    %277 = vmatprep.subr.bf16.mxu0 0
    %278 = vmatpush1.bf16.msra.mxu0 0
    %279 = vmatprep.mubr.bf16.mxu0 0
    %280 = vmatmul.mubr.bf16.gmra.mrb[0].mxu0 %v175
    %v281 = vpop.f32.mrb[0].mxu0
    %v282 = vadd.f32 %v197, %v281
    %v283 = vpop.f32.mrb[0].mxu0
    %v284 = vpop.f32.mrb[0].mxu0
    %v285 = vpop.f32.mrb[0].mxu0
    %286 = vdwg.mxu0
    %v287 = vmax.f32 %v282, 0.0
    %v288 = vpack.c.bf16 %v287, %v287
    %v289 = vld [vmem:[#allocation6] sm:$0xf]
    %v290 = vld [vmem:[#allocation6 + $0x4] sm:$0xf]
    %v291 = vld [vmem:[#allocation6 + $0x8] sm:$0xf]
    %v292 = vld [vmem:[#allocation6 + $0xc] sm:$0xf]
    %v293 = vld [vmem:[#allocation6 + $0x10] sm:$0xf]
    %v294 = vld [vmem:[#allocation6 + $0x14] sm:$0xf]
    %v295 = vld [vmem:[#allocation6 + $0x18] sm:$0xf]
    %v296 = vld [vmem:[#allocation6 + $0x1c] sm:$0xf]
    %v297 = vld [vmem:[#allocation6 + $0x20] sm:$0xf]
    %v298 = vld [vmem:[#allocation6 + $0x24] sm:$0xf]
    %v299 = vld [vmem:[#allocation6 + $0x28] sm:$0xf]
    %v300 = vld [vmem:[#allocation6 + $0x2c] sm:$0xf]
    %v301 = vld [vmem:[#allocation6 + $0x30] sm:$0xf]
    %v302 = vld [vmem:[#allocation6 + $0x34] sm:$0xf]
    %v303 = vld [vmem:[#allocation6 + $0x38] sm:$0xf]
    %v304 = vld [vmem:[#allocation6 + $0x3c] sm:$0xf]
    %v305 = vld [vmem:[%s4 + $0x2] sm:$0x1]
    %v307 = vlaneseq
    %v308 = vshrl.u32 %v307, 7
    %v309 = vsub.s32 0, %v308
    %v310 = vrot.slane %v305, %v309
    %v328 = vunpack.c.l.b16 %v289
    %v329 = vunpack.c.l.b16 %v290
    %v330 = vunpack.c.l.b16 %v291
    %v331 = vunpack.c.l.b16 %v292
    %v332 = vunpack.c.l.b16 %v293
    %v333 = vunpack.c.l.b16 %v294
    %v334 = vunpack.c.l.b16 %v295
    %v335 = vunpack.c.l.b16 %v296
    %v336 = vunpack.c.l.b16 %v297
    %v337 = vunpack.c.l.b16 %v298
    %v338 = vunpack.c.l.b16 %v299
    %v339 = vunpack.c.l.b16 %v300
    %v340 = vunpack.c.l.b16 %v301
    %v341 = vunpack.c.l.b16 %v302
    %v342 = vunpack.c.l.b16 %v303
    %v343 = vunpack.c.l.b16 %v304
    %v344 = vpack.c.b16 %v329, %v328
    %v345 = vpack.c.b16 %v331, %v330
    %v346 = vpack.c.b16 %v333, %v332
    %v347 = vpack.c.b16 %v335, %v334
    %v348 = vpack.c.b16 %v337, %v336
    %v349 = vpack.c.b16 %v339, %v338
    %v350 = vpack.c.b16 %v341, %v340
    %v351 = vpack.c.b16 %v343, %v342
    %360 = vmatprep.subr.bf16.mxu0 0
    %361 = vmatpush1.bf16.msra.mxu0 %v344
    %362 = vmatprep.subr.bf16.mxu0 0
    %363 = vmatpush1.bf16.msra.mxu0 %v345
    %364 = vmatprep.subr.bf16.mxu0 0
    %365 = vmatpush1.bf16.msra.mxu0 %v346
    %366 = vmatprep.subr.bf16.mxu0 0
    %367 = vmatpush1.bf16.msra.mxu0 %v347
    %368 = vmatprep.subr.bf16.mxu0 0
    %369 = vmatpush1.bf16.msra.mxu0 %v348
    %370 = vmatprep.subr.bf16.mxu0 0
    %371 = vmatpush1.bf16.msra.mxu0 %v349
    %372 = vmatprep.subr.bf16.mxu0 0
    %373 = vmatpush1.bf16.msra.mxu0 %v350
    %374 = vmatprep.subr.bf16.mxu0 0
    %375 = vmatpush1.bf16.msra.mxu0 %v351
    %376 = vmatprep.subr.bf16.mxu0 0
    %377 = vmatpush1.bf16.msra.mxu0 0
    %378 = vmatprep.subr.bf16.mxu0 0
    %379 = vmatpush1.bf16.msra.mxu0 0
    %380 = vmatprep.subr.bf16.mxu0 0
    %381 = vmatpush1.bf16.msra.mxu0 0
    %382 = vmatprep.subr.bf16.mxu0 0
    %383 = vmatpush1.bf16.msra.mxu0 0
    %384 = vmatprep.subr.bf16.mxu0 0
    %385 = vmatpush1.bf16.msra.mxu0 0
    %386 = vmatprep.subr.bf16.mxu0 0
    %387 = vmatpush1.bf16.msra.mxu0 0
    %388 = vmatprep.subr.bf16.mxu0 0
    %389 = vmatpush1.bf16.msra.mxu0 0
    %390 = vmatprep.subr.bf16.mxu0 0
    %391 = vmatpush1.bf16.msra.mxu0 0
    %392 = vmatprep.mubr.bf16.mxu0 0
    %393 = vmatmul.mubr.bf16.gmra.mrb[0].mxu0 %v288
    %v394 = vpop.f32.mrb[0].mxu0
    %v395 = vadd.f32 %v310, %v394
    %v396 = vpop.f32.mrb[0].mxu0
    %v397 = vpop.f32.mrb[0].mxu0
    %v398 = vpop.f32.mrb[0].mxu0
    %399 = vdwg.mxu0
    %v400 = vpack.c.bf16 %v395, %v395
    %401 = vst [vmem:[%s5] sm:$0xf] %v400
    // Predicated region
    $region34: #{_forward.1} parent=1 // pred_check
      _
    $region35: #{_forward.1} parent=1 // pred_check_branch
      %403 = sbr.rel (0) target = $region37
    $region36: #{_forward.1} parent=1 // pred_region
      _
    $region37: #{_forward.1} parent=1 // pred_fallthru
      _
    // Predicated region
    $region38: #{_forward.1} parent=1 // pred_check
      _
    $region39: #{_forward.1} parent=1 // pred_check_branch
      %405 = sbr.rel (0) target = $region41
    $region40: #{_forward.1} parent=1 // pred_region
      _
    $region41: #{_forward.1} parent=1 // pred_fallthru
      _
    %406 = vsyncpa [#allocation3], 1
    %407 = vsyncpa [#allocation5], 1

</llo_original>
